<compile_context>
chip_gen: v7x
topology: tpu7x:2x2x1
jax: 0.10.0
libtpu: 0.0.40
codegen_flags: <defaults>
</compile_context>

<pallas_src>
import jax
import jax.numpy as jnp
from jax.experimental import pallas as pl
from jax.experimental.pallas import tpu as pltpu


def _ceil_div(a, b):
    return -(-a // b)


def _round_up(a, m):
    return _ceil_div(a, m) * m


def mlp_kernel(x_ref, w0_ref, b0_ref, w1_ref, b1_ref, w2_ref, b2_ref, o_ref):
    """Fused 3-layer MLP forward for one batch tile.

    x_ref : [TB, D_in]      bf16 batch tile
    wK_ref: [D_k, D_{k+1}]  bf16, VMEM-resident (constant index_map)
    bK_ref: [1, D_{k+1}]    f32
    o_ref : [TB, D_out]     f32 softmax probabilities (unpadded; D_out == full last dim)
    """
    cdt = w0_ref.dtype  # bf16 MXU operand dtype (bf16-native on v5e/v6e/v7x MXUs)

    # Layer 0: bf16 x bf16 MXU dot, f32 accumulate -> bias -> dropout(p=0 => identity) -> ReLU.
    # TODO(synk): dropout with p>0 is not implemented (module config uses dropouts=[0.0, 0.0]).
    h = jnp.dot(x_ref[...], w0_ref[...], preferred_element_type=jnp.float32)
    h = jnp.maximum(h + b0_ref[...], 0.0)

    # Layer 1: feed the MXU bf16 operands (single-pass matmul path); bias/ReLU stay f32 on the VPU.
    h = jnp.dot(h.astype(cdt), w1_ref[...], preferred_element_type=jnp.float32)
    h = jnp.maximum(h + b1_ref[...], 0.0)

    # Output layer + numerically-stable softmax over the (unpadded) class dim.
    logits = jnp.dot(h.astype(cdt), w2_ref[...], preferred_element_type=jnp.float32)
    logits = logits + b2_ref[...]
    m = jnp.max(logits, axis=-1, keepdims=True)
    e = jnp.exp(logits - m)
    # approx=True lowers to the otherwise-idle EUP slot; ~1e-3 relative error on the denominator.
    inv = pl.reciprocal(jnp.sum(e, axis=-1, keepdims=True), approx=True)
    o_ref[...] = (e * inv).astype(o_ref.dtype)


def prepare_params(params, compute_dtype=jnp.bfloat16):
    """One-time (per-model) prep: weights -> bf16 MXU operands, biases -> f32 [1, D]."""
    prepared = []
    for w, b in params:
        prepared.append((jnp.asarray(w, compute_dtype),
                         jnp.asarray(b, jnp.float32).reshape(1, -1)))
    return prepared


def classifier_nn_forward(x, prepared_params, *, batch_tile=2048):
    """prepared_params = [(w0, b0), (w1, b1), (w2, b2)], wK: [D_k, D_{k+1}] bf16, bK: [1, D_{k+1}] f32."""
    (w0, b0), (w1, b1), (w2, b2) = prepared_params
    B, D_in = x.shape
    H0 = w0.shape[1]
    H1 = w1.shape[1]
    D_out = w2.shape[1]
    compute_dtype = w0.dtype

    xc = x.astype(compute_dtype)  # bf16 input halves HBM read bytes

    # Batch tiling: TB multiple of 8, as large as batch_tile allows (per-grid-step overhead
    # ~0.35us dominates for tiny tiles). No jnp.pad of x: grid = cdiv(B, TB); Pallas masks the
    # ragged last block's output writes, and softmax is per-row so garbage rows stay isolated.
    TB = _round_up(min(int(batch_tile), _round_up(B, 8)), 8)
    steps = _ceil_div(B, TB)
    # v7x: 2 TCs share the "parallel" grid; prefer an even step count when it costs nothing.
    if steps > 1 and steps % 2 == 1:
        alt_tb = _round_up(_ceil_div(B, steps + 1), 8)
        if alt_tb >= 8 and _ceil_div(B, alt_tb) % 2 == 0:
            TB = alt_tb
            steps = _ceil_div(B, TB)

    def resident(shape):
        # Constant index_map -> the block is DMA'd once and stays VMEM-resident across the grid.
        return pl.BlockSpec(shape, lambda i: (0, 0))

    cdt_bytes = jnp.dtype(compute_dtype).itemsize
    cost = pl.CostEstimate(
        flops=2 * B * (D_in * H0 + H0 * H1 + H1 * D_out),
        transcendentals=B * (D_out + 1),  # exp per logit + 1 reciprocal per row
        bytes_accessed=(
            B * D_in * cdt_bytes                                   # x
            + (D_in * H0 + H0 * H1 + H1 * D_out) * cdt_bytes       # weights
            + (H0 + H1 + D_out) * 4                                # biases
            + B * D_out * 4                                        # output (unpadded)
        ),
    )

    out = pl.pallas_call(
        mlp_kernel,
        out_shape=jax.ShapeDtypeStruct((B, D_out), jnp.float32),
        grid=(steps,),
        in_specs=[
            pl.BlockSpec((TB, D_in), lambda i: (i, 0)),  # batch-tiled input (auto double-buffered)
            resident((D_in, H0)),
            resident((1, H0)),
            resident((H0, H1)),
            resident((1, H1)),
            resident((H1, D_out)),
            resident((1, D_out)),
        ],
        out_specs=pl.BlockSpec((TB, D_out), lambda i: (i, 0)),
        compiler_params=pltpu.CompilerParams(
            dimension_semantics=("parallel",),  # shard batch-grid steps across TCs on v7x
        ),
        cost_estimate=cost,
    )(xc, w0, b0, w1, b1, w2, b2)

    return out


def init_params(key, all_layer_dims):
    """Deterministic init matching nn.Linear shapes (weight stored transposed as [d_in, d_out])."""
    params = []
    for i in range(len(all_layer_dims) - 1):
        d_in, d_out = all_layer_dims[i], all_layer_dims[i + 1]
        key, kw, kb = jax.random.split(key, 3)
        bound = 1.0 / jnp.sqrt(d_in)
        w = jax.random.uniform(kw, (d_in, d_out), jnp.float32, -bound, bound)
        b = jax.random.uniform(kb, (1, d_out), jnp.float32, -bound, bound)
        params.append((w, b))
    return params


if __name__ == "__main__":
    # Module config: input_size=16, hidden_layer_dims=[32, 32], output_size=8, dropouts=[0.0, 0.0]
    input_size = 16
    hidden_layer_dims = [32, 32]
    output_size = 8
    all_layer_dims = [input_size] + hidden_layer_dims + [output_size]

    key = jax.random.PRNGKey(0)
    key, kx = jax.random.split(key)
    batch = 128  # with batch_tile=32 -> grid=(4,): multi-step AND even (v7x 2-TC load balance)
    x = jax.random.normal(kx, (batch, input_size), jnp.float32)

    params = init_params(key, all_layer_dims)
    prepared = prepare_params(params)  # casts hoisted out of the per-call path

    out = classifier_nn_forward(x, prepared, batch_tile=32)
    out = jax.block_until_ready(out)

    # Pure-JAX reference with the same bf16 rounding of x / activations / weights (f32 math).
    def ref_forward(x, params):
        h = x.astype(jnp.bfloat16).astype(jnp.float32)
        for i, (w, b) in enumerate(params):
            wr = w.astype(jnp.bfloat16).astype(jnp.float32)
            z = h.astype(jnp.bfloat16).astype(jnp.float32) @ wr + b
            if i < len(params) - 1:
                h = jnp.maximum(z, 0.0)  # dropout p=0 -> identity
            else:
                return jax.nn.softmax(z, axis=-1)

    ref = ref_forward(x, params)

    assert out.shape == (batch, output_size)
    # Tolerances cover pl.reciprocal(approx=True) (~1e-3 relative) + bf16 operand rounding.
    assert jnp.allclose(out, ref, atol=5e-3, rtol=5e-3)
    assert jnp.allclose(jnp.sum(out, axis=-1), 1.0, atol=5e-3)

    print("KERNEL_OK")
</pallas_src>

<mosaic_0001>
module attributes {stable_mosaic.version = 11 : i64} {
  func.func @mlp_kernel(%arg0: i32, %arg1: memref<32x16xbf16, #tpu.memory_space<vmem>>, %arg2: memref<16x32xbf16, #tpu.memory_space<vmem>>, %arg3: memref<1x32xf32, #tpu.memory_space<vmem>>, %arg4: memref<32x32xbf16, #tpu.memory_space<vmem>>, %arg5: memref<1x32xf32, #tpu.memory_space<vmem>>, %arg6: memref<32x8xbf16, #tpu.memory_space<vmem>>, %arg7: memref<1x8xf32, #tpu.memory_space<vmem>>, %arg8: memref<32x8xf32, #tpu.memory_space<vmem>>) attributes {dimension_semantics = [#tpu.dimension_semantics<parallel>], iteration_bounds = array<i64: 4>, scalar_prefetch = 0 : i64, scratch_operands = 0 : i64, tpu.core_type = #tpu.core_type<tc>, window_params = [{transform_indices = @transform_0, window_bounds = array<i64: 32, 16>}, {pipeline_mode = #tpu.pipeline_mode<synchronous>, transform_indices = @transform_1, window_bounds = array<i64: 16, 32>}, {pipeline_mode = #tpu.pipeline_mode<synchronous>, transform_indices = @transform_2, window_bounds = array<i64: 1, 32>}, {pipeline_mode = #tpu.pipeline_mode<synchronous>, transform_indices = @transform_3, window_bounds = array<i64: 32, 32>}, {pipeline_mode = #tpu.pipeline_mode<synchronous>, transform_indices = @transform_4, window_bounds = array<i64: 1, 32>}, {pipeline_mode = #tpu.pipeline_mode<synchronous>, transform_indices = @transform_5, window_bounds = array<i64: 32, 8>}, {pipeline_mode = #tpu.pipeline_mode<synchronous>, transform_indices = @transform_6, window_bounds = array<i64: 1, 8>}, {transform_indices = @transform_7, window_bounds = array<i64: 32, 8>}]} {
    %c0 = arith.constant 0 : index
    %c0_0 = arith.constant 0 : index
    %0 = vector.load %arg1[%c0, %c0_0] : memref<32x16xbf16, #tpu.memory_space<vmem>>, vector<32x16xbf16>
    %c0_1 = arith.constant 0 : index
    %c0_2 = arith.constant 0 : index
    %1 = vector.load %arg2[%c0_1, %c0_2] : memref<16x32xbf16, #tpu.memory_space<vmem>>, vector<16x32xbf16>
    %cst = arith.constant dense<0.000000e+00> : vector<32x32xf32>
    %2 = tpu.matmul %0, %1, %cst {dimension_numbers = #tpu.dot_dimension_numbers<[1], [0], [0], [1], [0, 0, 1, 1], [], []>} : vector<32x16xbf16>, vector<16x32xbf16>, vector<32x32xf32> -> vector<32x32xf32>
    %c0_3 = arith.constant 0 : index
    %c0_4 = arith.constant 0 : index
    %3 = vector.load %arg3[%c0_3, %c0_4] : memref<1x32xf32, #tpu.memory_space<vmem>>, vector<1x32xf32>
    %4 = vector.broadcast %3 : vector<1x32xf32> to vector<32x32xf32>
    %5 = arith.addf %2, %4 : vector<32x32xf32>
    %cst_5 = arith.constant 0.000000e+00 : f32
    %6 = vector.broadcast %cst_5 : f32 to vector<32x32xf32>
    %7 = arith.maximumf %5, %6 : vector<32x32xf32>
    %8 = arith.truncf %7 : vector<32x32xf32> to vector<32x32xbf16>
    %c0_6 = arith.constant 0 : index
    %c0_7 = arith.constant 0 : index
    %9 = vector.load %arg4[%c0_6, %c0_7] : memref<32x32xbf16, #tpu.memory_space<vmem>>, vector<32x32xbf16>
    %cst_8 = arith.constant dense<0.000000e+00> : vector<32x32xf32>
    %10 = tpu.matmul %8, %9, %cst_8 {dimension_numbers = #tpu.dot_dimension_numbers<[1], [0], [0], [1], [0, 0, 1, 1], [], []>} : vector<32x32xbf16>, vector<32x32xbf16>, vector<32x32xf32> -> vector<32x32xf32>
    %c0_9 = arith.constant 0 : index
    %c0_10 = arith.constant 0 : index
    %11 = vector.load %arg5[%c0_9, %c0_10] : memref<1x32xf32, #tpu.memory_space<vmem>>, vector<1x32xf32>
    %12 = vector.broadcast %11 : vector<1x32xf32> to vector<32x32xf32>
    %13 = arith.addf %10, %12 : vector<32x32xf32>
    %cst_11 = arith.constant 0.000000e+00 : f32
    %14 = vector.broadcast %cst_11 : f32 to vector<32x32xf32>
    %15 = arith.maximumf %13, %14 : vector<32x32xf32>
    %16 = arith.truncf %15 : vector<32x32xf32> to vector<32x32xbf16>
    %c0_12 = arith.constant 0 : index
    %c0_13 = arith.constant 0 : index
    %17 = vector.load %arg6[%c0_12, %c0_13] : memref<32x8xbf16, #tpu.memory_space<vmem>>, vector<32x8xbf16>
    %cst_14 = arith.constant dense<0.000000e+00> : vector<32x8xf32>
    %18 = tpu.matmul %16, %17, %cst_14 {dimension_numbers = #tpu.dot_dimension_numbers<[1], [0], [0], [1], [0, 0, 1, 1], [], []>} : vector<32x32xbf16>, vector<32x8xbf16>, vector<32x8xf32> -> vector<32x8xf32>
    %c0_15 = arith.constant 0 : index
    %c0_16 = arith.constant 0 : index
    %19 = vector.load %arg7[%c0_15, %c0_16] : memref<1x8xf32, #tpu.memory_space<vmem>>, vector<1x8xf32>
    %20 = vector.broadcast %19 : vector<1x8xf32> to vector<32x8xf32>
    %21 = arith.addf %18, %20 : vector<32x8xf32>
    %cst_17 = arith.constant dense<0xFF800000> : vector<32xf32>
    %22 = vector.multi_reduction <maximumf>, %21, %cst_17 [1] : vector<32x8xf32> to vector<32xf32>
    %23 = vector.shape_cast %22 : vector<32xf32> to vector<32x1xf32>
    %24 = vector.broadcast %23 : vector<32x1xf32> to vector<32x8xf32>
    %25 = arith.subf %21, %24 : vector<32x8xf32>
    %26 = math.exp %25 : vector<32x8xf32>
    %cst_18 = arith.constant dense<0.000000e+00> : vector<32xf32>
    %27 = vector.multi_reduction <add>, %26, %cst_18 [1] : vector<32x8xf32> to vector<32xf32>
    %28 = vector.shape_cast %27 : vector<32xf32> to vector<32x1xf32>
    %29 = tpu.reciprocal %28 {approx = true} : vector<32x1xf32> -> vector<32x1xf32>
    %30 = vector.broadcast %29 : vector<32x1xf32> to vector<32x8xf32>
    %31 = arith.mulf %26, %30 : vector<32x8xf32>
    %c0_19 = arith.constant 0 : index
    %c0_20 = arith.constant 0 : index
    %32 = vector.load %arg8[%c0_19, %c0_20] : memref<32x8xf32, #tpu.memory_space<vmem>>, vector<32x8xf32>
    tpu.vector_store %arg8[%c0_19, %c0_20], %31 {strides = array<i32>} : memref<32x8xf32, #tpu.memory_space<vmem>>, vector<32x8xf32>,
    return
  }
  func.func @transform_0(%arg0: i32) -> (i32, i32) {
    %c0_i32 = arith.constant 0 : i32
    %c0_i32_0 = arith.constant 0 : i32
    return %arg0, %c0_i32 : i32, i32
  }
  func.func @transform_1(%arg0: i32) -> (i32, i32) {
    %c0_i32 = arith.constant 0 : i32
    %c0_i32_0 = arith.constant 0 : i32
    %c0_i32_1 = arith.constant 0 : i32
    return %c0_i32, %c0_i32_0 : i32, i32
  }
  func.func @transform_2(%arg0: i32) -> (i32, i32) {
    %c0_i32 = arith.constant 0 : i32
    %c0_i32_0 = arith.constant 0 : i32
    %c0_i32_1 = arith.constant 0 : i32
    return %c0_i32, %c0_i32_0 : i32, i32
  }
  func.func @transform_3(%arg0: i32) -> (i32, i32) {
    %c0_i32 = arith.constant 0 : i32
    %c0_i32_0 = arith.constant 0 : i32
    %c0_i32_1 = arith.constant 0 : i32
    return %c0_i32, %c0_i32_0 : i32, i32
  }
  func.func @transform_4(%arg0: i32) -> (i32, i32) {
    %c0_i32 = arith.constant 0 : i32
    %c0_i32_0 = arith.constant 0 : i32
    %c0_i32_1 = arith.constant 0 : i32
    return %c0_i32, %c0_i32_0 : i32, i32
  }
  func.func @transform_5(%arg0: i32) -> (i32, i32) {
    %c0_i32 = arith.constant 0 : i32
    %c0_i32_0 = arith.constant 0 : i32
    %c0_i32_1 = arith.constant 0 : i32
    return %c0_i32, %c0_i32_0 : i32, i32
  }
  func.func @transform_6(%arg0: i32) -> (i32, i32) {
    %c0_i32 = arith.constant 0 : i32
    %c0_i32_0 = arith.constant 0 : i32
    %c0_i32_1 = arith.constant 0 : i32
    return %c0_i32, %c0_i32_0 : i32, i32
  }
  func.func @transform_7(%arg0: i32) -> (i32, i32) {
    %c0_i32 = arith.constant 0 : i32
    %c0_i32_0 = arith.constant 0 : i32
    return %arg0, %c0_i32 : i32, i32
  }
}

</mosaic_0001>

<llo_original>
// kernel: tpu_custom_call.1
$region0: #{tpu_custom_call.1}
  #allocation0 [shape = 'u32[]', space=smem, size = 0x4, offset = 0x4, fixed_abs, tag = 'smem constant byte address 0x4 - core index']
  #allocation1 [shape = 'u32[144,128]{1,0:T(1,128)}', space=vmem, size = 0x12000, scoped, tag = 'internal scratch']
  %s0 = inlined_call_operand.vmem [shape: bf16[128,16], index: 0, kind: input, shape index: {}]
  %s1 = inlined_call_operand.vmem [shape: bf16[16,32], index: 1, kind: input, shape index: {}]
  %s2 = inlined_call_operand.vmem [shape: f32[1,32], index: 2, kind: input, shape index: {}]
  %s3 = inlined_call_operand.vmem [shape: bf16[32,32], index: 3, kind: input, shape index: {}]
  %s4 = inlined_call_operand.vmem [shape: f32[1,32], index: 4, kind: input, shape index: {}]
  %s5 = inlined_call_operand.vmem [shape: bf16[32,8], index: 5, kind: input, shape index: {}]
  %s6 = inlined_call_operand.vmem [shape: f32[1,8], index: 6, kind: input, shape index: {}]
  %s7 = inlined_call_operand.vmem [shape: f32[128,8], index: 7, kind: output, shape index: {}]
  %s8 = sld [smem:[#allocation0]]
  $region61: #{tpu_custom_call.1} parent=0
    _
  %s10 = ssub.s32 1, %s8
  %s11 = scalar_select 0, %s10, %s8
  loop: start=0, step=1, limit=6
  $region2: #{tpu_custom_call.1} parent=0 // loop_pre_header
    _
  $region3: #{tpu_custom_call.1} parent=0 // loop_header
    %s13 = sphi 0, %s17
    %p14 = scmp.ge.s32.totalorder %s13, 6
    %s23 = sphi 0, %s25
    %s26 = sphi 0, %s23
    %s27 = sphi 0, %s26
    %s43 = sphi 0, %s27
    %s47 = sphi 0, %s47
    %s49 = sphi 0, %s47
    %s50 = sphi 0, %s49
    %s64 = sphi 0, %s50
    %s68 = sphi 0, %s68
    %s70 = sphi 0, %s68
    %s71 = sphi 0, %s70
    %s85 = sphi 0, %s71
    %s89 = sphi 0, %s89
    %s91 = sphi 0, %s89
    %s92 = sphi 0, %s91
    %s106 = sphi 0, %s92
    %s110 = sphi 0, %s110
    %s112 = sphi 0, %s110
    %s113 = sphi 0, %s112
    %s127 = sphi 0, %s113
    %s131 = sphi 0, %s131
    %s133 = sphi 0, %s131
    %s134 = sphi 0, %s133
    %s148 = sphi 0, %s134
    %s152 = sphi 0, %s152
    %s154 = sphi 0, %s152
    %s155 = sphi 0, %s154
    %s169 = sphi 0, %s155
    %s175 = sphi 0, %s177
    %s178 = sphi 0, %s175
    %s179 = sphi 0, %s178
    %s195 = sphi 0, %s179
  $region4: #{tpu_custom_call.1} parent=0 // loop_header_branch
    %16 = sbr.rel (%p14) target = $region8
  $region5: #{tpu_custom_call.1} parent=0 // loop_body
    %s18 = ssub.s32 %s13, 1
    %s19 = ssub.s32 %s13, 2
    %s20 = sadd.s32 %s13, 1
    %s21 = ssub.s32 %s13, %s20
    %p22 = scmp.eq.s32.totalorder %s21, 0
    %s24 = sadd.s32 %s23, 1
    %s25 = scalar_select %p22, %s23, %s24
    %p28 = pneg %p22
    %p29 = scmp.eq.s32.totalorder %s13, 3
    %p30 = por %p28, %p29
    %p31 = scmp.ne.s32.totalorder %s23, %s26
    %p32 = scmp.eq.s32.totalorder %s13, 0
    %p33 = por %p31, %p32
    %p34 = scmp.ne.s32.totalorder %s23, %s26
    %p35 = scmp.eq.s32.totalorder %s18, 3
    %p36 = por %p34, %p35
    %p37 = scmp.ne.s32.totalorder %s26, %s27
    %p38 = scmp.eq.s32.totalorder %s18, 0
    %p39 = por %p37, %p38
    %p40 = scmp.ne.s32.totalorder %s26, %s27
    %p41 = scmp.eq.s32.totalorder %s19, 3
    %p42 = por %p40, %p41
    %p44 = scmp.ne.s32.totalorder %s27, %s43
    %p45 = scmp.eq.s32.totalorder %s19, 0
    %p46 = por %p44, %p45
    %s48 = sadd.s32 %s47, 1
    %p51 = scmp.eq.s32.totalorder %s13, 3
    %p52 = scmp.ne.s32.totalorder %s47, %s49
    %p53 = scmp.eq.s32.totalorder %s13, 0
    %p54 = por %p52, %p53
    %p55 = scmp.ne.s32.totalorder %s47, %s49
    %p56 = scmp.eq.s32.totalorder %s18, 3
    %p57 = por %p55, %p56
    %p58 = scmp.ne.s32.totalorder %s49, %s50
    %p59 = scmp.eq.s32.totalorder %s18, 0
    %p60 = por %p58, %p59
    %p61 = scmp.ne.s32.totalorder %s49, %s50
    %p62 = scmp.eq.s32.totalorder %s19, 3
    %p63 = por %p61, %p62
    %p65 = scmp.ne.s32.totalorder %s50, %s64
    %p66 = scmp.eq.s32.totalorder %s19, 0
    %p67 = por %p65, %p66
    %s69 = sadd.s32 %s68, 1
    %p72 = scmp.eq.s32.totalorder %s13, 3
    %p73 = scmp.ne.s32.totalorder %s68, %s70
    %p74 = scmp.eq.s32.totalorder %s13, 0
    %p75 = por %p73, %p74
    %p76 = scmp.ne.s32.totalorder %s68, %s70
    %p77 = scmp.eq.s32.totalorder %s18, 3
    %p78 = por %p76, %p77
    %p79 = scmp.ne.s32.totalorder %s70, %s71
    %p80 = scmp.eq.s32.totalorder %s18, 0
    %p81 = por %p79, %p80
    %p82 = scmp.ne.s32.totalorder %s70, %s71
    %p83 = scmp.eq.s32.totalorder %s19, 3
    %p84 = por %p82, %p83
    %p86 = scmp.ne.s32.totalorder %s71, %s85
    %p87 = scmp.eq.s32.totalorder %s19, 0
    %p88 = por %p86, %p87
    %s90 = sadd.s32 %s89, 1
    %p93 = scmp.eq.s32.totalorder %s13, 3
    %p94 = scmp.ne.s32.totalorder %s89, %s91
    %p95 = scmp.eq.s32.totalorder %s13, 0
    %p96 = por %p94, %p95
    %p97 = scmp.ne.s32.totalorder %s89, %s91
    %p98 = scmp.eq.s32.totalorder %s18, 3
    %p99 = por %p97, %p98
    %p100 = scmp.ne.s32.totalorder %s91, %s92
    %p101 = scmp.eq.s32.totalorder %s18, 0
    %p102 = por %p100, %p101
    %p103 = scmp.ne.s32.totalorder %s91, %s92
    %p104 = scmp.eq.s32.totalorder %s19, 3
    %p105 = por %p103, %p104
    %p107 = scmp.ne.s32.totalorder %s92, %s106
    %p108 = scmp.eq.s32.totalorder %s19, 0
    %p109 = por %p107, %p108
    %s111 = sadd.s32 %s110, 1
    %p114 = scmp.eq.s32.totalorder %s13, 3
    %p115 = scmp.ne.s32.totalorder %s110, %s112
    %p116 = scmp.eq.s32.totalorder %s13, 0
    %p117 = por %p115, %p116
    %p118 = scmp.ne.s32.totalorder %s110, %s112
    %p119 = scmp.eq.s32.totalorder %s18, 3
    %p120 = por %p118, %p119
    %p121 = scmp.ne.s32.totalorder %s112, %s113
    %p122 = scmp.eq.s32.totalorder %s18, 0
    %p123 = por %p121, %p122
    %p124 = scmp.ne.s32.totalorder %s112, %s113
    %p125 = scmp.eq.s32.totalorder %s19, 3
    %p126 = por %p124, %p125
    %p128 = scmp.ne.s32.totalorder %s113, %s127
    %p129 = scmp.eq.s32.totalorder %s19, 0
    %p130 = por %p128, %p129
    %s132 = sadd.s32 %s131, 1
    %p135 = scmp.eq.s32.totalorder %s13, 3
    %p136 = scmp.ne.s32.totalorder %s131, %s133
    %p137 = scmp.eq.s32.totalorder %s13, 0
    %p138 = por %p136, %p137
    %p139 = scmp.ne.s32.totalorder %s131, %s133
    %p140 = scmp.eq.s32.totalorder %s18, 3
    %p141 = por %p139, %p140
    %p142 = scmp.ne.s32.totalorder %s133, %s134
    %p143 = scmp.eq.s32.totalorder %s18, 0
    %p144 = por %p142, %p143
    %p145 = scmp.ne.s32.totalorder %s133, %s134
    %p146 = scmp.eq.s32.totalorder %s19, 3
    %p147 = por %p145, %p146
    %p149 = scmp.ne.s32.totalorder %s134, %s148
    %p150 = scmp.eq.s32.totalorder %s19, 0
    %p151 = por %p149, %p150
    %s153 = sadd.s32 %s152, 1
    %p156 = scmp.eq.s32.totalorder %s13, 3
    %p157 = scmp.ne.s32.totalorder %s152, %s154
    %p158 = scmp.eq.s32.totalorder %s13, 0
    %p159 = por %p157, %p158
    %p160 = scmp.ne.s32.totalorder %s152, %s154
    %p161 = scmp.eq.s32.totalorder %s18, 3
    %p162 = por %p160, %p161
    %p163 = scmp.ne.s32.totalorder %s154, %s155
    %p164 = scmp.eq.s32.totalorder %s18, 0
    %p165 = por %p163, %p164
    %p166 = scmp.ne.s32.totalorder %s154, %s155
    %p167 = scmp.eq.s32.totalorder %s19, 3
    %p168 = por %p166, %p167
    %p170 = scmp.ne.s32.totalorder %s155, %s169
    %p171 = scmp.eq.s32.totalorder %s19, 0
    %p172 = por %p170, %p171
    %s173 = ssub.s32 %s13, %s20
    %p174 = scmp.eq.s32.totalorder %s173, 0
    %s176 = sadd.s32 %s175, 1
    %s177 = scalar_select %p174, %s175, %s176
    %p180 = pneg %p174
    %p181 = scmp.eq.s32.totalorder %s13, 3
    %p182 = por %p180, %p181
    %p183 = scmp.ne.s32.totalorder %s175, %s178
    %p184 = scmp.eq.s32.totalorder %s13, 0
    %p185 = por %p183, %p184
    %p186 = scmp.ne.s32.totalorder %s175, %s178
    %p187 = scmp.eq.s32.totalorder %s18, 3
    %p188 = por %p186, %p187
    %p189 = scmp.ne.s32.totalorder %s178, %s179
    %p190 = scmp.eq.s32.totalorder %s18, 0
    %p191 = por %p189, %p190
    %p192 = scmp.ne.s32.totalorder %s178, %s179
    %p193 = scmp.eq.s32.totalorder %s19, 3
    %p194 = por %p192, %p193
    %p196 = scmp.ne.s32.totalorder %s179, %s195
    %p197 = scmp.eq.s32.totalorder %s19, 0
    %p198 = por %p196, %p197
    %p199 = scmp.le.s32.totalorder 1, %s13
    %p200 = scmp.lt.s32.totalorder %s13, 5
    %p201 = pnand %p199, %p200
    %p202 = pneg %p201
    // Predicated region
    $region9: #{tpu_custom_call.1} parent=5 // pred_check
      _
    $region10: #{tpu_custom_call.1} parent=5 // pred_check_branch
      %204 = sbr.rel (%p201) target = $region12
    $region11: #{tpu_custom_call.1} parent=5 // pred_region
      %s205 = ssub.s32 %s13, 1
      // Predicated region
      $region13: #{tpu_custom_call.1} parent=11 // pred_check
        %p206 = pneg %p60
      $region14: #{tpu_custom_call.1} parent=11 // pred_check_branch
        %208 = sbr.rel (%p206) target = $region16
      $region15: #{tpu_custom_call.1} parent=11 // pred_region
        _
      $region16: #{tpu_custom_call.1} parent=11 // pred_fallthru
        _
      // Predicated region
      $region17: #{tpu_custom_call.1} parent=11 // pred_check
        %p209 = pneg %p81
      $region18: #{tpu_custom_call.1} parent=11 // pred_check_branch
        %211 = sbr.rel (%p209) target = $region20
      $region19: #{tpu_custom_call.1} parent=11 // pred_region
        _
      $region20: #{tpu_custom_call.1} parent=11 // pred_fallthru
        _
      // Predicated region
      $region21: #{tpu_custom_call.1} parent=11 // pred_check
        %p212 = pneg %p102
      $region22: #{tpu_custom_call.1} parent=11 // pred_check_branch
        %214 = sbr.rel (%p212) target = $region24
      $region23: #{tpu_custom_call.1} parent=11 // pred_region
        _
      $region24: #{tpu_custom_call.1} parent=11 // pred_fallthru
        _
      // Predicated region
      $region25: #{tpu_custom_call.1} parent=11 // pred_check
        %p215 = pneg %p123
      $region26: #{tpu_custom_call.1} parent=11 // pred_check_branch
        %217 = sbr.rel (%p215) target = $region28
      $region27: #{tpu_custom_call.1} parent=11 // pred_region
        _
      $region28: #{tpu_custom_call.1} parent=11 // pred_fallthru
        _
      // Predicated region
      $region29: #{tpu_custom_call.1} parent=11 // pred_check
        %p218 = pneg %p144
      $region30: #{tpu_custom_call.1} parent=11 // pred_check_branch
        %220 = sbr.rel (%p218) target = $region32
      $region31: #{tpu_custom_call.1} parent=11 // pred_region
        _
      $region32: #{tpu_custom_call.1} parent=11 // pred_fallthru
        _
      // Predicated region
      $region33: #{tpu_custom_call.1} parent=11 // pred_check
        %p221 = pneg %p165
      $region34: #{tpu_custom_call.1} parent=11 // pred_check_branch
        %223 = sbr.rel (%p221) target = $region36
      $region35: #{tpu_custom_call.1} parent=11 // pred_region
        _
      $region36: #{tpu_custom_call.1} parent=11 // pred_fallthru
        _
    $region12: #{tpu_custom_call.1} parent=5 // pred_fallthru
      _
    %p224 = scmp.lt.s32.totalorder %s13, 4
    // Predicated region
    $region37: #{tpu_custom_call.1} parent=5 // pred_check
      %p225 = pneg %p224
    $region38: #{tpu_custom_call.1} parent=5 // pred_check_branch
      %227 = sbr.rel (%p225) target = $region40
    $region39: #{tpu_custom_call.1} parent=5 // pred_region
      // Predicated region
      $region41: #{tpu_custom_call.1} parent=39 // pred_check
        %p228 = pneg %p33
      $region42: #{tpu_custom_call.1} parent=39 // pred_check_branch
        %230 = sbr.rel (%p228) target = $region44
      $region43: #{tpu_custom_call.1} parent=39 // pred_region
        %s231 = smul.u32 4, %s13
        %p232 = scmp.lt.s32.totalorder %s231, 15
        %s233 = scalar_select %p232, %s231, 15
        %s234 = smul.addr %s233, 4
        %s235 = scalar_lea.vmem %s0, %s234
        %s236 = smul.u32 4, %s13
      $region44: #{tpu_custom_call.1} parent=39 // pred_fallthru
        _
    $region40: #{tpu_custom_call.1} parent=5 // pred_fallthru
      _
    %p237 = scmp.le.s32.totalorder 1, %s13
    %p238 = scmp.lt.s32.totalorder %s13, 5
    %p239 = pnand %p237, %p238
    %p240 = pneg %p239
    // Predicated region
    $region45: #{tpu_custom_call.1} parent=5 // pred_check
      _
    $region46: #{tpu_custom_call.1} parent=5 // pred_check_branch
      %242 = sbr.rel (%p239) target = $region48
    $region47: #{tpu_custom_call.1} parent=5 // pred_region
      %s243 = ssub.s32 %s13, 1
      %s244 = smul.u32 4, %s18
      %p245 = scmp.lt.s32.totalorder %s244, 15
      %s246 = scalar_select %p245, %s244, 15
      %s247 = smul.addr %s246, 4
      %s248 = scalar_lea.vmem %s0, %s247
      %p249 = pneg %p39
      %p250 = pneg %p36
      %p251 = pneg %p60
      %p252 = pneg %p57
      %p253 = pneg %p81
      %p254 = pneg %p78
      %p255 = pneg %p102
      %p256 = pneg %p99
      %p257 = pneg %p123
      %p258 = pneg %p120
      %p259 = pneg %p144
      %p260 = pneg %p141
      %p261 = pneg %p165
      %p262 = pneg %p162
      %p263 = pneg %p191
      %p264 = pneg %p188
      %s265 = smul.u32 4, %s18
      %p266 = scmp.lt.s32.totalorder %s265, 15
      %s267 = scalar_select %p266, %s265, 15
      %s268 = smul.addr %s267, 8
      %s269 = scalar_lea.vmem %s7, %s268
      %s270 = smul.u32 4, %s18
      %p271 = scmp.lt.s32.totalorder %s270, 15
      %s272 = scalar_select %p271, %s270, 15
      %s273 = smul.addr %s272, 4
      %s274 = scalar_lea.vmem %s0, %s273
      %s275 = smul.u32 4, %s18
      %s276 = smul.u32 4, %s18
      %p277 = scmp.lt.s32.totalorder %s276, 15
      %s278 = scalar_select %p277, %s276, 15
      %s279 = smul.addr %s278, 8
      %s280 = scalar_lea.vmem %s7, %s279
      %s281 = smul.u32 4, %s18
      %v283 = vld [vmem:[%s274] sm:$0xf]
      %v284 = vld [vmem:[%s274 + $0x4] sm:$0xf]
      %v285 = vld [vmem:[%s274 + $0x8] sm:$0xf]
      %v286 = vld [vmem:[%s274 + $0xc] sm:$0xf]
      %v287 = vld [vmem:[%s1] sm:$0xf]
      %v288 = vld [vmem:[%s1 + $0x4] sm:$0xf]
      %v289 = vld [vmem:[%s2] sm:$0x1]
      %v291 = vlaneseq
      %v292 = vshrl.u32 %v291, 7
      %v293 = vsub.s32 0, %v292
      %v294 = vrot.slane %v289, %v293
      %v300 = vunpack.c.l.b16 %v283
      %v301 = vunpack.c.l.b16 %v284
      %v302 = vunpack.c.l.b16 %v285
      %v303 = vunpack.c.l.b16 %v286
      %v304 = vpack.c.b16 %v301, %v300
      %v305 = vpack.c.b16 %v303, %v302
      %v308 = vunpack.c.l.b16 %v287
      %v309 = vunpack.c.l.b16 %v288
      %v310 = vpack.c.b16 %v309, %v308
      %vm312 = vcmask 130048
      %v314 = vsel %vm312, %v304, 0
      %v317 = vsel %vm312, %v305, 0
      %319 = vmatprep.subr.bf16.mxu0 0
      %320 = vmatpush1.bf16.msra.mxu0 %v310
      %321 = vmatprep.subr.bf16.mxu0 0
      %322 = vmatpush1.bf16.msra.mxu0 0
      %323 = vmatprep.subr.bf16.mxu0 0
      %324 = vmatpush1.bf16.msra.mxu0 0
      %325 = vmatprep.subr.bf16.mxu0 0
      %326 = vmatpush1.bf16.msra.mxu0 0
      %327 = vmatprep.subr.bf16.mxu0 0
      %328 = vmatpush1.bf16.msra.mxu0 0
      %329 = vmatprep.subr.bf16.mxu0 0
      %330 = vmatpush1.bf16.msra.mxu0 0
      %331 = vmatprep.subr.bf16.mxu0 0
      %332 = vmatpush1.bf16.msra.mxu0 0
      %333 = vmatprep.subr.bf16.mxu0 0
      %334 = vmatpush1.bf16.msra.mxu0 0
      %335 = vmatprep.subr.bf16.mxu0 0
      %336 = vmatpush1.bf16.msra.mxu0 0
      %337 = vmatprep.subr.bf16.mxu0 0
      %338 = vmatpush1.bf16.msra.mxu0 0
      %339 = vmatprep.subr.bf16.mxu0 0
      %340 = vmatpush1.bf16.msra.mxu0 0
      %341 = vmatprep.subr.bf16.mxu0 0
      %342 = vmatpush1.bf16.msra.mxu0 0
      %343 = vmatprep.subr.bf16.mxu0 0
      %344 = vmatpush1.bf16.msra.mxu0 0
      %345 = vmatprep.subr.bf16.mxu0 0
      %346 = vmatpush1.bf16.msra.mxu0 0
      %347 = vmatprep.subr.bf16.mxu0 0
      %348 = vmatpush1.bf16.msra.mxu0 0
      %349 = vmatprep.subr.bf16.mxu0 0
      %350 = vmatpush1.bf16.msra.mxu0 0
      %351 = vmatprep.mubr.bf16.mxu0 0
      %352 = vmatmul.mubr.bf16.gmra.mrb[0].mxu0 %v314
      %v353 = vpop.f32.mrb[0].mxu0
      %v354 = vadd.f32 %v294, %v353
      %v355 = vpop.f32.mrb[0].mxu0
      %v356 = vpop.f32.mrb[0].mxu0
      %v357 = vadd.f32 %v294, %v356
      %v358 = vpop.f32.mrb[0].mxu0
      %359 = vmatprep.mubr.bf16.mxu0 0
      %360 = vmatmul.mubr.bf16.gmra.mrb[0].mxu0 %v317
      %v361 = vpop.f32.mrb[0].mxu0
      %v362 = vadd.f32 %v294, %v361
      %v363 = vpop.f32.mrb[0].mxu0
      %v364 = vpop.f32.mrb[0].mxu0
      %v365 = vadd.f32 %v294, %v364
      %v366 = vpop.f32.mrb[0].mxu0
      %367 = vdwg.mxu0
      %v368 = vmax.f32 %v354, 0.0
      %v369 = vmax.f32 %v357, 0.0
      %v370 = vmax.f32 %v362, 0.0
      %v371 = vmax.f32 %v365, 0.0
      %v372 = vpack.c.bf16 %v369, %v368
      %v373 = vpack.c.bf16 %v371, %v370
      %v374 = vld [vmem:[%s3] sm:$0xf]
      %v375 = vld [vmem:[%s3 + $0x4] sm:$0xf]
      %v376 = vld [vmem:[%s3 + $0x8] sm:$0xf]
      %v377 = vld [vmem:[%s3 + $0xc] sm:$0xf]
      %v378 = vld [vmem:[%s4] sm:$0x1]
      %v380 = vlaneseq
      %v381 = vshrl.u32 %v380, 7
      %v382 = vsub.s32 0, %v381
      %v383 = vrot.slane %v378, %v382
      %v389 = vunpack.c.l.b16 %v374
      %v390 = vunpack.c.l.b16 %v375
      %v391 = vunpack.c.l.b16 %v376
      %v392 = vunpack.c.l.b16 %v377
      %v393 = vpack.c.b16 %v390, %v389
      %v394 = vpack.c.b16 %v392, %v391
      %vm397 = vcmask 261120
      %v399 = vsel %vm397, %v372, 0
      %v402 = vsel %vm397, %v373, 0
      %404 = vmatprep.subr.bf16.mxu0 0
      %405 = vmatpush1.bf16.msra.mxu0 %v393
      %406 = vmatprep.subr.bf16.mxu0 0
      %407 = vmatpush1.bf16.msra.mxu0 %v394
      %408 = vmatprep.subr.bf16.mxu0 0
      %409 = vmatpush1.bf16.msra.mxu0 0
      %410 = vmatprep.subr.bf16.mxu0 0
      %411 = vmatpush1.bf16.msra.mxu0 0
      %412 = vmatprep.subr.bf16.mxu0 0
      %413 = vmatpush1.bf16.msra.mxu0 0
      %414 = vmatprep.subr.bf16.mxu0 0
      %415 = vmatpush1.bf16.msra.mxu0 0
      %416 = vmatprep.subr.bf16.mxu0 0
      %417 = vmatpush1.bf16.msra.mxu0 0
      %418 = vmatprep.subr.bf16.mxu0 0
      %419 = vmatpush1.bf16.msra.mxu0 0
      %420 = vmatprep.subr.bf16.mxu0 0
      %421 = vmatpush1.bf16.msra.mxu0 0
      %422 = vmatprep.subr.bf16.mxu0 0
      %423 = vmatpush1.bf16.msra.mxu0 0
      %424 = vmatprep.subr.bf16.mxu0 0
      %425 = vmatpush1.bf16.msra.mxu0 0
      %426 = vmatprep.subr.bf16.mxu0 0
      %427 = vmatpush1.bf16.msra.mxu0 0
      %428 = vmatprep.subr.bf16.mxu0 0
      %429 = vmatpush1.bf16.msra.mxu0 0
      %430 = vmatprep.subr.bf16.mxu0 0
      %431 = vmatpush1.bf16.msra.mxu0 0
      %432 = vmatprep.subr.bf16.mxu0 0
      %433 = vmatpush1.bf16.msra.mxu0 0
      %434 = vmatprep.subr.bf16.mxu0 0
      %435 = vmatpush1.bf16.msra.mxu0 0
      %436 = vmatprep.mubr.bf16.mxu0 0
      %437 = vmatmul.mubr.bf16.gmra.mrb[0].mxu0 %v399
      %v438 = vpop.f32.mrb[0].mxu0
      %v439 = vadd.f32 %v383, %v438
      %v440 = vpop.f32.mrb[0].mxu0
      %v441 = vpop.f32.mrb[0].mxu0
      %v442 = vadd.f32 %v383, %v441
      %v443 = vpop.f32.mrb[0].mxu0
      %444 = vmatprep.mubr.bf16.mxu0 0
      %445 = vmatmul.mubr.bf16.gmra.mrb[0].mxu0 %v402
      %v446 = vpop.f32.mrb[0].mxu0
      %v447 = vadd.f32 %v383, %v446
      %v448 = vpop.f32.mrb[0].mxu0
      %v449 = vpop.f32.mrb[0].mxu0
      %v450 = vadd.f32 %v383, %v449
      %v451 = vpop.f32.mrb[0].mxu0
      %452 = vdwg.mxu0
      %v453 = vmax.f32 %v439, 0.0
      %v454 = vmax.f32 %v442, 0.0
      %v455 = vmax.f32 %v447, 0.0
      %v456 = vmax.f32 %v450, 0.0
      %v457 = vpack.c.bf16 %v454, %v453
      %v458 = vpack.c.bf16 %v456, %v455
      %v459 = vld [vmem:[%s5] sm:$0xf]
      %v460 = vld [vmem:[%s5 + $0x4] sm:$0xf]
      %v461 = vld [vmem:[%s5 + $0x8] sm:$0xf]
      %v462 = vld [vmem:[%s5 + $0xc] sm:$0xf]
      %v463 = vld [vmem:[%s6] sm:$0x1]
      %v465 = vlaneseq
      %v466 = vshrl.u32 %v465, 7
      %v467 = vsub.s32 0, %v466
      %v468 = vrot.slane %v463, %v467
      %v474 = vunpack.c.l.b16 %v459
      %v475 = vunpack.c.l.b16 %v460
      %v476 = vunpack.c.l.b16 %v461
      %v477 = vunpack.c.l.b16 %v462
      %v478 = vpack.c.b16 %v475, %v474
      %v479 = vpack.c.b16 %v477, %v476
      %v483 = vsel %vm397, %v457, 0
      %v486 = vsel %vm397, %v458, 0
      %488 = vmatprep.subr.bf16.mxu0 0
      %489 = vmatpush1.bf16.msra.mxu0 %v478
      %490 = vmatprep.subr.bf16.mxu0 0
      %491 = vmatpush1.bf16.msra.mxu0 %v479
      %492 = vmatprep.subr.bf16.mxu0 0
      %493 = vmatpush1.bf16.msra.mxu0 0
      %494 = vmatprep.subr.bf16.mxu0 0
      %495 = vmatpush1.bf16.msra.mxu0 0
      %496 = vmatprep.subr.bf16.mxu0 0
      %497 = vmatpush1.bf16.msra.mxu0 0
      %498 = vmatprep.subr.bf16.mxu0 0
      %499 = vmatpush1.bf16.msra.mxu0 0
      %500 = vmatprep.subr.bf16.mxu0 0
      %501 = vmatpush1.bf16.msra.mxu0 0
      %502 = vmatprep.subr.bf16.mxu0 0
      %503 = vmatpush1.bf16.msra.mxu0 0
      %504 = vmatprep.subr.bf16.mxu0 0
      %505 = vmatpush1.bf16.msra.mxu0 0
      %506 = vmatprep.subr.bf16.mxu0 0
      %507 = vmatpush1.bf16.msra.mxu0 0
      %508 = vmatprep.subr.bf16.mxu0 0
      %509 = vmatpush1.bf16.msra.mxu0 0
      %510 = vmatprep.subr.bf16.mxu0 0
      %511 = vmatpush1.bf16.msra.mxu0 0
      %512 = vmatprep.subr.bf16.mxu0 0
      %513 = vmatpush1.bf16.msra.mxu0 0
      %514 = vmatprep.subr.bf16.mxu0 0
      %515 = vmatpush1.bf16.msra.mxu0 0
      %516 = vmatprep.subr.bf16.mxu0 0
      %517 = vmatpush1.bf16.msra.mxu0 0
      %518 = vmatprep.subr.bf16.mxu0 0
      %519 = vmatpush1.bf16.msra.mxu0 0
      %520 = vmatprep.mubr.bf16.mxu0 0
      %521 = vmatmul.mubr.bf16.gmra.mrb[0].mxu0 %v483
      %v522 = vpop.f32.mrb[0].mxu0
      %v523 = vadd.f32 %v468, %v522
      %v524 = vpop.f32.mrb[0].mxu0
      %v525 = vpop.f32.mrb[0].mxu0
      %v526 = vadd.f32 %v468, %v525
      %v527 = vpop.f32.mrb[0].mxu0
      %528 = vmatprep.mubr.bf16.mxu0 0
      %529 = vmatmul.mubr.bf16.gmra.mrb[0].mxu0 %v486
      %v530 = vpop.f32.mrb[0].mxu0
      %v531 = vadd.f32 %v468, %v530
      %v532 = vpop.f32.mrb[0].mxu0
      %v533 = vpop.f32.mrb[0].mxu0
      %v534 = vadd.f32 %v468, %v533
      %v535 = vpop.f32.mrb[0].mxu0
      %536 = vdwg.mxu0
      %vm537 = vcmask 64512
      %v538 = vsel %vm537, %v523, -inf
      %539 = vmax.xlane.f32.xlu0 %v538
      %v540 = vpop.xlane.xlu0 %539
      %v541 = vsel %vm537, %v526, -inf
      %542 = vmax.xlane.f32.xlu0 %v541
      %v543 = vpop.xlane.xlu0 %542
      %v544 = vsel %vm537, %v531, -inf
      %545 = vmax.xlane.f32.xlu0 %v544
      %v546 = vpop.xlane.xlu0 %545
      %v547 = vsel %vm537, %v534, -inf
      %548 = vmax.xlane.f32.xlu0 %v547
      %v549 = vpop.xlane.xlu0 %548
      %v550 = vsub.f32 %v523, %v540
      %v551 = vsub.f32 %v526, %v543
      %v552 = vsub.f32 %v531, %v546
      %v553 = vsub.f32 %v534, %v549
      %v554 = vmul.f32 %v550, 1.442695
      %v555 = vpow.pop %v554
      %v556 = vmul.f32 %v551, 1.442695
      %v557 = vpow.pop %v556
      %v558 = vmul.f32 %v552, 1.442695
      %v559 = vpow.pop %v558
      %v560 = vmul.f32 %v553, 1.442695
      %v561 = vpow.pop %v560
      %v562 = vsel %vm537, %v555, 0.0
      %563 = vadd.xlane.f32.xlu0 %v562
      %v564 = vpop.xlane.xlu0 %563
      %v565 = vsel %vm537, %v557, 0.0
      %566 = vadd.xlane.f32.xlu0 %v565
      %v567 = vpop.xlane.xlu0 %566
      %v568 = vsel %vm537, %v559, 0.0
      %569 = vadd.xlane.f32.xlu0 %v568
      %v570 = vpop.xlane.xlu0 %569
      %v571 = vsel %vm537, %v561, 0.0
      %572 = vadd.xlane.f32.xlu0 %v571
      %v573 = vpop.xlane.xlu0 %572
      %v574 = vrcp.pop %v564
      %v575 = vrcp.pop %v567
      %v576 = vrcp.pop %v570
      %v577 = vrcp.pop %v573
      %v578 = vmul.f32 %v555, %v574
      %v579 = vmul.f32 %v557, %v575
      %v580 = vmul.f32 %v559, %v576
      %v581 = vmul.f32 %v561, %v577
      %582 = vst.msk [vmem:[%s280] sm:$0xff] %vm537, %v578
      %583 = vst.msk [vmem:[%s280 + $0x8] sm:$0xff] %vm537, %v579
      %584 = vst.msk [vmem:[%s280 + $0x10] sm:$0xff] %vm537, %v580
      %585 = vst.msk [vmem:[%s280 + $0x18] sm:$0xff] %vm537, %v581
      %s586 = smul.u32 4, %s18
      %p587 = scmp.lt.s32.totalorder %s586, 15
      %s588 = scalar_select %p587, %s586, 15
      %s589 = smul.addr %s588, 8
      %s590 = scalar_lea.vmem %s7, %s589
      // Predicated region
      $region49: #{tpu_custom_call.1} parent=47 // pred_check
        %p591 = pneg %p188
      $region50: #{tpu_custom_call.1} parent=47 // pred_check_branch
        %593 = sbr.rel (%p591) target = $region52
      $region51: #{tpu_custom_call.1} parent=47 // pred_region
        %s594 = smul.u32 4, %s18
      $region52: #{tpu_custom_call.1} parent=47 // pred_fallthru
        _
    $region48: #{tpu_custom_call.1} parent=5 // pred_fallthru
      _
    %p595 = scmp.le.s32.totalorder 2, %s13
    // Predicated region
    $region53: #{tpu_custom_call.1} parent=5 // pred_check
      %p596 = pneg %p595
    $region54: #{tpu_custom_call.1} parent=5 // pred_check_branch
      %598 = sbr.rel (%p596) target = $region56
    $region55: #{tpu_custom_call.1} parent=5 // pred_region
      %s599 = ssub.s32 %s13, 2
      // Predicated region
      $region57: #{tpu_custom_call.1} parent=55 // pred_check
        %p600 = pneg %p194
      $region58: #{tpu_custom_call.1} parent=55 // pred_check_branch
        %602 = sbr.rel (%p600) target = $region60
      $region59: #{tpu_custom_call.1} parent=55 // pred_region
        %s603 = smul.u32 4, %s19
        %p604 = scmp.lt.s32.totalorder %s603, 15
        %s605 = scalar_select %p604, %s603, 15
        %s606 = smul.addr %s605, 8
        %s607 = scalar_lea.vmem %s7, %s606
      $region60: #{tpu_custom_call.1} parent=55 // pred_fallthru
        _
    $region56: #{tpu_custom_call.1} parent=5 // pred_fallthru
      _
  $region6: #{tpu_custom_call.1} parent=0 // loop_footer
    %s17 = sadd.s32 1, %s13
  $region7: #{tpu_custom_call.1} parent=0 // loop_footer_branch
    %12 = sbr.rel target = $region3
  $region8: #{tpu_custom_call.1} parent=0 // loop_exit
    _

</llo_original>
